<compile_context>
chip_gen: v7x
topology: tpu7x:2x2x1
jax: 0.10.0
libtpu: 0.0.40
codegen_flags: <defaults>
</compile_context>

<pallas_src>
import functools

import jax
import jax.numpy as jnp
from jax import lax
from jax.experimental import pallas as pl
from jax.experimental.pallas import tpu as pltpu


def _round_up(x, m):
    return (x + m - 1) // m * m


def _split_ce_kernel(h_ref, wt_ref, b_ref, t_ref, out_ref,
                     m_sc, l_sc, tgt_sc,
                     *, n_total, v_total, tile_n, tile_v):
    i = pl.program_id(0)          # row-tile axis  ("parallel")
    j = pl.program_id(1)          # vocab-tile axis ("arbitrary" reduction)

    @pl.when(j == 0)
    def _():
        m_sc[...] = jnp.full_like(m_sc, -jnp.inf)
        l_sc[...] = jnp.zeros_like(l_sc)
        tgt_sc[...] = jnp.zeros_like(tgt_sc)

    # Native-dtype MXU matmul with f32 accumulation; contraction on H
    # (weight already transposed to (H, V) in the wrapper -> no XLU transpose).
    logits = lax.dot_general(
        h_ref[...], wt_ref[...],
        dimension_numbers=(((1,), (0,)), ((), ())),
        preferred_element_type=jnp.float32)                        # (TN, TV)
    logits = logits + b_ref[...].astype(jnp.float32)

    # Global column index of every lane in this vocab tile; mask padded columns.
    col = j * tile_v + lax.broadcasted_iota(jnp.int32, logits.shape, 1)
    logits = jnp.where(col < v_total, logits, -jnp.inf)

    # Online logsumexp update.
    m_prev = m_sc[...]
    m_new = jnp.maximum(m_prev, jnp.max(logits, axis=-1, keepdims=True))
    alpha = jnp.exp(m_prev - m_new)                                # 0 on first tile
    l_sc[...] = l_sc[...] * alpha + jnp.sum(jnp.exp(logits - m_new),
                                            axis=-1, keepdims=True)
    m_sc[...] = m_new

    # logits[row, targets[row]] via one-hot compare on the *global* column index
    # (padded lanes never match since targets < v_total).
    # TODO(synk): out-of-range targets silently contribute 0 (no gather bounds check).
    tgt = t_ref[...]                                               # (TN, 1) int32
    tgt_sc[...] += jnp.sum(jnp.where(col == tgt, logits, 0.0),
                           axis=-1, keepdims=True)

    @pl.when(j == pl.num_programs(1) - 1)
    def _():
        lse = m_sc[...] + jnp.log(l_sc[...])                       # (TN, 1)
        row = i * tile_n + lax.broadcasted_iota(jnp.int32, lse.shape, 0)
        per_row = jnp.where(row < n_total, lse - tgt_sc[...], 0.0)  # mask padded rows
        tile_sum = jnp.sum(per_row)
        # Lane-dense, unmasked store of this row-tile's partial loss sum.
        out_ref[...] = jnp.broadcast_to(tile_sum, out_ref.shape).astype(jnp.float32)


def split_cross_entropy_loss(weight, bias, hiddens, targets, *,
                             tile_n=256, tile_v=512):
    """Pallas implementation of SplitCrossEntropyLoss.forward (head split only)."""
    V, H = weight.shape
    N = hiddens.shape[0]

    # Tile sizes (tunable; sweep per chip). Clamp to the (padded) problem size.
    tn = min(tile_n, _round_up(N, 8))
    tv = min(tile_v, _round_up(V, 128))
    n_pad = _round_up(N, tn)
    v_pad = _round_up(V, tv)

    # Pre-transpose the weight once (lane-dense V on the RHS of the matmul).
    wt = weight.T                                                  # (H, V)
    if v_pad != V:
        wt = jnp.pad(wt, ((0, 0), (0, v_pad - V)))
        bias = jnp.pad(bias, (0, v_pad - V))
    if n_pad != N:
        hiddens = jnp.pad(hiddens, ((0, n_pad - N), (0, 0)))
        targets = jnp.pad(targets, (0, n_pad - N))

    bias2 = bias.reshape(1, v_pad)
    tgt2 = targets.reshape(n_pad, 1).astype(jnp.int32)

    n_tiles = n_pad // tn
    v_tiles = v_pad // tv

    # Explicit VMEM budget: double-buffered input blocks + f32 logits + scratch.
    itemsize = jnp.dtype(weight.dtype).itemsize
    block_bytes = (2 * (tn * H + H * tv + tv) * itemsize           # h, w, bias blocks
                   + 2 * tn * 4                                    # target block
                   + tn * tv * 4                                   # f32 logits
                   + 3 * tn * 4 + 2 * 8 * 128 * 4)                 # scratch + out
    vmem_limit = int(min(64 * 1024 * 1024,
                         max(32 * 1024 * 1024, 2 * block_bytes)))

    kernel = functools.partial(_split_ce_kernel,
                               n_total=N, v_total=V, tile_n=tn, tile_v=tv)

    cost = pl.CostEstimate(
        flops=2 * N * V * H,
        transcendentals=N * V,
        bytes_accessed=int(hiddens.nbytes + n_tiles * wt.nbytes + bias2.nbytes
                           + tgt2.nbytes + n_tiles * 8 * 128 * 4))

    partial_sums = pl.pallas_call(
        kernel,
        out_shape=jax.ShapeDtypeStruct((n_tiles, 8, 128), jnp.float32),
        grid_spec=pltpu.PrefetchScalarGridSpec(
            num_scalar_prefetch=0,
            grid=(n_tiles, v_tiles),
            in_specs=[
                pl.BlockSpec((tn, H), lambda i, j: (i, 0)),        # hidden row tile
                pl.BlockSpec((H, tv), lambda i, j: (0, j)),        # weight.T vocab tile
                pl.BlockSpec((1, tv), lambda i, j: (0, j)),        # bias vocab tile
                pl.BlockSpec((tn, 1), lambda i, j: (i, 0)),        # targets row tile
            ],
            out_specs=pl.BlockSpec((1, 8, 128), lambda i, j: (i, 0, 0)),
            scratch_shapes=[pltpu.VMEM((tn, 1), jnp.float32)] * 3),  # m, l, tgt_logit
        compiler_params=pltpu.CompilerParams(
            dimension_semantics=("parallel", "arbitrary"),
            vmem_limit_bytes=vmem_limit),
        cost_estimate=cost,
    )(hiddens, wt, bias2, tgt2)

    total = jnp.sum(partial_sums[:, 0, 0])
    return (total / N).astype(weight.dtype)


class SplitCrossEntropyLossPallas:
    """Mirror of the PyTorch module's __init__ / forward (approximate-softmax head path)."""

    def __init__(self, hidden_size, splits, verbose=False):
        self.hidden_size = hidden_size
        self.splits = [0] + splits + [100 * 1000000]
        self.nsplits = len(self.splits) - 1
        self.verbose = verbose
        if self.nsplits > 1:
            # TODO(synk): tail_vectors/tail_bias are unused by the reference forward
            # (split_on_targets puts everything in the head), so they stay unused here.
            self.tail_vectors = jnp.zeros((self.nsplits - 1, hidden_size), jnp.float32)
            self.tail_bias = jnp.zeros((self.nsplits - 1,), jnp.float32)

    def forward(self, weight, bias, hiddens, targets):
        return split_cross_entropy_loss(weight, bias, hiddens, targets)


def _reference(weight, bias, hiddens, targets):
    logits = hiddens @ weight.T + bias
    logp = jax.nn.log_softmax(logits, axis=-1)
    ent = -jnp.take_along_axis(logp, targets.reshape(-1, 1), axis=1)
    return (ent.astype(jnp.float32).sum() / targets.shape[0]).astype(weight.dtype)


if __name__ == "__main__":
    key = jax.random.PRNGKey(0)
    crit = SplitCrossEntropyLossPallas(32, splits=[], verbose=False)

    # Case 1: batch=2, seq=8, hidden=32, vocab=200 (exercises vocab padding/mask).
    batch, seq, hidden_size, vocab = 2, 8, 32, 200
    N = batch * seq
    kw, kb, kh, kt = jax.random.split(key, 4)
    weight = jax.random.normal(kw, (vocab, hidden_size), jnp.float32) * 0.1
    bias = jax.random.normal(kb, (vocab,), jnp.float32) * 0.1
    hiddens = jax.random.normal(kh, (N, hidden_size), jnp.float32)
    targets = jax.random.randint(kt, (N,), 0, vocab, jnp.int32)

    loss = jax.block_until_ready(crit.forward(weight, bias, hiddens, targets))
    ref = _reference(weight, bias, hiddens, targets)
    assert jnp.allclose(loss, ref, rtol=1e-5, atol=1e-5), (loss, ref)

    # Case 2: ragged N and vocab (exercises both row and vocab masking).
    batch2, seq2, vocab2 = 3, 7, 130
    N2 = batch2 * seq2
    kw2, kb2, kh2, kt2 = jax.random.split(jax.random.PRNGKey(1), 4)
    weight2 = jax.random.normal(kw2, (vocab2, hidden_size), jnp.float32) * 0.1
    bias2 = jax.random.normal(kb2, (vocab2,), jnp.float32) * 0.1
    hiddens2 = jax.random.normal(kh2, (N2, hidden_size), jnp.float32)
    targets2 = jax.random.randint(kt2, (N2,), 0, vocab2, jnp.int32)

    loss2 = jax.block_until_ready(
        split_cross_entropy_loss(weight2, bias2, hiddens2, targets2, tile_n=8, tile_v=128))
    ref2 = _reference(weight2, bias2, hiddens2, targets2)
    assert jnp.allclose(loss2, ref2, rtol=1e-5, atol=1e-5), (loss2, ref2)

    print("KERNEL_OK")
</pallas_src>

<mosaic_0001>
module attributes {stable_mosaic.version = 11 : i64} {
  func.func @_split_ce_kernel(%arg0: i32, %arg1: i32, %arg2: memref<16x32xf32, #tpu.memory_space<vmem>>, %arg3: memref<32x256xf32, #tpu.memory_space<vmem>>, %arg4: memref<1x256xf32, #tpu.memory_space<vmem>>, %arg5: memref<16x1xi32, #tpu.memory_space<vmem>>, %arg6: memref<1x8x128xf32, #tpu.memory_space<vmem>>, %arg7: memref<16x1xf32, #tpu.memory_space<vmem>>, %arg8: memref<16x1xf32, #tpu.memory_space<vmem>>, %arg9: memref<16x1xf32, #tpu.memory_space<vmem>>) attributes {dimension_semantics = [#tpu.dimension_semantics<parallel>, #tpu.dimension_semantics<arbitrary>], iteration_bounds = array<i64: 1, 1>, scalar_prefetch = 0 : i64, scratch_operands = 3 : i64, tpu.core_type = #tpu.core_type<tc>, window_params = [{transform_indices = @transform_0, window_bounds = array<i64: 16, 32>}, {transform_indices = @transform_1, window_bounds = array<i64: 32, 256>}, {transform_indices = @transform_2, window_bounds = array<i64: 1, 256>}, {transform_indices = @transform_3, window_bounds = array<i64: 16, 1>}, {transform_indices = @transform_4, window_bounds = array<i64: 1, 8, 128>}]} {
    %c0_i32 = arith.constant 0 : i32
    %0 = arith.cmpi eq, %arg1, %c0_i32 : i32
    %1 = arith.extui %0 : i1 to i32
    %c0_i32_0 = arith.constant 0 : i32
    %2 = arith.cmpi ne, %1, %c0_i32_0 : i32
    scf.if %2 {
      %cst_27 = arith.constant 0xFF800000 : f32
      %46 = vector.broadcast %cst_27 : f32 to vector<16x1xf32>
      %c0_28 = arith.constant 0 : index
      %c0_29 = arith.constant 0 : index
      %47 = vector.load %arg7[%c0_28, %c0_29] : memref<16x1xf32, #tpu.memory_space<vmem>>, vector<16x1xf32>
      tpu.vector_store %arg7[%c0_28, %c0_29], %46 {strides = array<i32>} : memref<16x1xf32, #tpu.memory_space<vmem>>, vector<16x1xf32>,
      %cst_30 = arith.constant 0.000000e+00 : f32
      %48 = vector.broadcast %cst_30 : f32 to vector<16x1xf32>
      %c0_31 = arith.constant 0 : index
      %c0_32 = arith.constant 0 : index
      %49 = vector.load %arg8[%c0_31, %c0_32] : memref<16x1xf32, #tpu.memory_space<vmem>>, vector<16x1xf32>
      tpu.vector_store %arg8[%c0_31, %c0_32], %48 {strides = array<i32>} : memref<16x1xf32, #tpu.memory_space<vmem>>, vector<16x1xf32>,
      %cst_33 = arith.constant 0.000000e+00 : f32
      %50 = vector.broadcast %cst_33 : f32 to vector<16x1xf32>
      %c0_34 = arith.constant 0 : index
      %c0_35 = arith.constant 0 : index
      %51 = vector.load %arg9[%c0_34, %c0_35] : memref<16x1xf32, #tpu.memory_space<vmem>>, vector<16x1xf32>
      tpu.vector_store %arg9[%c0_34, %c0_35], %50 {strides = array<i32>} : memref<16x1xf32, #tpu.memory_space<vmem>>, vector<16x1xf32>,
    } else {
    }
    %c0 = arith.constant 0 : index
    %c0_1 = arith.constant 0 : index
    %3 = vector.load %arg2[%c0, %c0_1] : memref<16x32xf32, #tpu.memory_space<vmem>>, vector<16x32xf32>
    %c0_2 = arith.constant 0 : index
    %c0_3 = arith.constant 0 : index
    %4 = vector.load %arg3[%c0_2, %c0_3] : memref<32x256xf32, #tpu.memory_space<vmem>>, vector<32x256xf32>
    %cst = arith.constant dense<0.000000e+00> : vector<16x256xf32>
    %5 = tpu.matmul %3, %4, %cst {dimension_numbers = #tpu.dot_dimension_numbers<[1], [0], [0], [1], [0, 0, 1, 1], [], []>} : vector<16x32xf32>, vector<32x256xf32>, vector<16x256xf32> -> vector<16x256xf32>
    %c0_4 = arith.constant 0 : index
    %c0_5 = arith.constant 0 : index
    %6 = vector.load %arg4[%c0_4, %c0_5] : memref<1x256xf32, #tpu.memory_space<vmem>>, vector<1x256xf32>
    %7 = vector.broadcast %6 : vector<1x256xf32> to vector<16x256xf32>
    %8 = arith.addf %5, %7 : vector<16x256xf32>
    %c256_i32 = arith.constant 256 : i32
    %9 = arith.muli %arg1, %c256_i32 : i32
    %10 = tpu.iota {dimensions = array<i32: 1>} : vector<16x256xi32>
    %11 = vector.broadcast %9 : i32 to vector<16x256xi32>
    %12 = arith.addi %11, %10 : vector<16x256xi32>
    %c200_i32 = arith.constant 200 : i32
    %13 = vector.broadcast %c200_i32 : i32 to vector<16x256xi32>
    %14 = arith.cmpi slt, %12, %13 : vector<16x256xi32>
    %cst_6 = arith.constant 0xFF800000 : f32
    %15 = vector.broadcast %cst_6 : f32 to vector<16x256xf32>
    %16 = arith.select %14, %8, %15 : vector<16x256xi1>, vector<16x256xf32>
    %c0_7 = arith.constant 0 : index
    %c0_8 = arith.constant 0 : index
    %17 = vector.load %arg7[%c0_7, %c0_8] : memref<16x1xf32, #tpu.memory_space<vmem>>, vector<16x1xf32>
    %cst_9 = arith.constant dense<0xFF800000> : vector<16xf32>
    %18 = vector.multi_reduction <maximumf>, %16, %cst_9 [1] : vector<16x256xf32> to vector<16xf32>
    %19 = vector.shape_cast %18 : vector<16xf32> to vector<16x1xf32>
    %20 = arith.maximumf %17, %19 : vector<16x1xf32>
    %21 = arith.subf %17, %20 : vector<16x1xf32>
    %22 = math.exp %21 : vector<16x1xf32>
    %c0_10 = arith.constant 0 : index
    %c0_11 = arith.constant 0 : index
    %23 = vector.load %arg8[%c0_10, %c0_11] : memref<16x1xf32, #tpu.memory_space<vmem>>, vector<16x1xf32>
    %24 = arith.mulf %23, %22 : vector<16x1xf32>
    %25 = vector.broadcast %20 : vector<16x1xf32> to vector<16x256xf32>
    %26 = arith.subf %16, %25 : vector<16x256xf32>
    %27 = math.exp %26 : vector<16x256xf32>
    %cst_12 = arith.constant dense<0.000000e+00> : vector<16xf32>
    %28 = vector.multi_reduction <add>, %27, %cst_12 [1] : vector<16x256xf32> to vector<16xf32>
    %29 = vector.shape_cast %28 : vector<16xf32> to vector<16x1xf32>
    %30 = arith.addf %24, %29 : vector<16x1xf32>
    %c0_13 = arith.constant 0 : index
    %c0_14 = arith.constant 0 : index
    %31 = vector.load %arg8[%c0_13, %c0_14] : memref<16x1xf32, #tpu.memory_space<vmem>>, vector<16x1xf32>
    tpu.vector_store %arg8[%c0_13, %c0_14], %30 {strides = array<i32>} : memref<16x1xf32, #tpu.memory_space<vmem>>, vector<16x1xf32>,
    %c0_15 = arith.constant 0 : index
    %c0_16 = arith.constant 0 : index
    %32 = vector.load %arg7[%c0_15, %c0_16] : memref<16x1xf32, #tpu.memory_space<vmem>>, vector<16x1xf32>
    tpu.vector_store %arg7[%c0_15, %c0_16], %20 {strides = array<i32>} : memref<16x1xf32, #tpu.memory_space<vmem>>, vector<16x1xf32>,
    %c0_17 = arith.constant 0 : index
    %c0_18 = arith.constant 0 : index
    %33 = vector.load %arg5[%c0_17, %c0_18] : memref<16x1xi32, #tpu.memory_space<vmem>>, vector<16x1xi32>
    %c0_19 = arith.constant 0 : index
    %c0_20 = arith.constant 0 : index
    %34 = vector.load %arg9[%c0_19, %c0_20] : memref<16x1xf32, #tpu.memory_space<vmem>>, vector<16x1xf32>
    %35 = vector.broadcast %33 : vector<16x1xi32> to vector<16x256xi32>
    %36 = arith.cmpi eq, %12, %35 : vector<16x256xi32>
    %cst_21 = arith.constant 0.000000e+00 : f32
    %37 = vector.broadcast %cst_21 : f32 to vector<16x256xf32>
    %38 = arith.select %36, %16, %37 : vector<16x256xi1>, vector<16x256xf32>
    %cst_22 = arith.constant dense<0.000000e+00> : vector<16xf32>
    %39 = vector.multi_reduction <add>, %38, %cst_22 [1] : vector<16x256xf32> to vector<16xf32>
    %40 = vector.shape_cast %39 : vector<16xf32> to vector<16x1xf32>
    %41 = arith.addf %34, %40 : vector<16x1xf32>
    %c0_23 = arith.constant 0 : index
    %c0_24 = arith.constant 0 : index
    %42 = vector.load %arg9[%c0_23, %c0_24] : memref<16x1xf32, #tpu.memory_space<vmem>>, vector<16x1xf32>
    tpu.vector_store %arg9[%c0_23, %c0_24], %41 {strides = array<i32>} : memref<16x1xf32, #tpu.memory_space<vmem>>, vector<16x1xf32>,
    %c0_i32_25 = arith.constant 0 : i32
    %43 = arith.cmpi eq, %arg1, %c0_i32_25 : i32
    %44 = arith.extui %43 : i1 to i32
    %c0_i32_26 = arith.constant 0 : i32
    %45 = arith.cmpi ne, %44, %c0_i32_26 : i32
    scf.if %45 {
      %c0_27 = arith.constant 0 : index
      %c0_28 = arith.constant 0 : index
      %46 = vector.load %arg7[%c0_27, %c0_28] : memref<16x1xf32, #tpu.memory_space<vmem>>, vector<16x1xf32>
      %c0_29 = arith.constant 0 : index
      %c0_30 = arith.constant 0 : index
      %47 = vector.load %arg8[%c0_29, %c0_30] : memref<16x1xf32, #tpu.memory_space<vmem>>, vector<16x1xf32>
      %48 = math.log %47 : vector<16x1xf32>
      %49 = arith.addf %46, %48 : vector<16x1xf32>
      %c16_i32 = arith.constant 16 : i32
      %50 = arith.muli %arg0, %c16_i32 : i32
      %51 = tpu.iota {dimensions = array<i32: 0>} : vector<16x1xi32>
      %52 = vector.broadcast %50 : i32 to vector<16x1xi32>
      %53 = arith.addi %52, %51 : vector<16x1xi32>
      %c16_i32_31 = arith.constant 16 : i32
      %54 = vector.broadcast %c16_i32_31 : i32 to vector<16x1xi32>
      %55 = arith.cmpi slt, %53, %54 : vector<16x1xi32>
      %c0_32 = arith.constant 0 : index
      %c0_33 = arith.constant 0 : index
      %56 = vector.load %arg9[%c0_32, %c0_33] : memref<16x1xf32, #tpu.memory_space<vmem>>, vector<16x1xf32>
      %57 = arith.subf %49, %56 : vector<16x1xf32>
      %cst_34 = arith.constant 0.000000e+00 : f32
      %58 = vector.broadcast %cst_34 : f32 to vector<16x1xf32>
      %59 = arith.select %55, %57, %58 : vector<16x1xi1>, vector<16x1xf32>
      %60 = vector.shape_cast %59 : vector<16x1xf32> to vector<1x16x1xf32>
      %cst_35 = arith.constant dense<0.000000e+00> : vector<1xf32>
      %61 = vector.multi_reduction <add>, %60, %cst_35 [1, 2] : vector<1x16x1xf32> to vector<1xf32>
      %62 = vector.shape_cast %61 : vector<1xf32> to vector<1x1x1xf32>
      %63 = vector.extract %62[0, 0, 0] : f32 from vector<1x1x1xf32>
      %64 = vector.broadcast %63 : f32 to vector<1x8x128xf32>
      %c0_36 = arith.constant 0 : index
      %c0_37 = arith.constant 0 : index
      %c0_38 = arith.constant 0 : index
      %65 = vector.load %arg6[%c0_36, %c0_37, %c0_38] : memref<1x8x128xf32, #tpu.memory_space<vmem>>, vector<1x8x128xf32>
      tpu.vector_store %arg6[%c0_36, %c0_37, %c0_38], %64 {strides = array<i32>} : memref<1x8x128xf32, #tpu.memory_space<vmem>>, vector<1x8x128xf32>,
    } else {
    }
    return
  }
  func.func @transform_0(%arg0: i32, %arg1: i32) -> (i32, i32) {
    %c0_i32 = arith.constant 0 : i32
    %c0_i32_0 = arith.constant 0 : i32
    return %arg0, %c0_i32 : i32, i32
  }
  func.func @transform_1(%arg0: i32, %arg1: i32) -> (i32, i32) {
    %c0_i32 = arith.constant 0 : i32
    %c0_i32_0 = arith.constant 0 : i32
    return %c0_i32, %arg1 : i32, i32
  }
  func.func @transform_2(%arg0: i32, %arg1: i32) -> (i32, i32) {
    %c0_i32 = arith.constant 0 : i32
    %c0_i32_0 = arith.constant 0 : i32
    return %c0_i32, %arg1 : i32, i32
  }
  func.func @transform_3(%arg0: i32, %arg1: i32) -> (i32, i32) {
    %c0_i32 = arith.constant 0 : i32
    %c0_i32_0 = arith.constant 0 : i32
    return %arg0, %c0_i32 : i32, i32
  }
  func.func @transform_4(%arg0: i32, %arg1: i32) -> (i32, i32, i32) {
    %c0_i32 = arith.constant 0 : i32
    %c0_i32_0 = arith.constant 0 : i32
    %c0_i32_1 = arith.constant 0 : i32
    return %arg0, %c0_i32, %c0_i32_0 : i32, i32, i32
  }
}

</mosaic_0001>

<llo_original>
// kernel: tpu_custom_call.1
$region0: #{tpu_custom_call.1}
  #allocation0 [shape = 'u32[]', space=smem, size = 0x4, offset = 0x4, fixed_abs, tag = 'smem constant byte address 0x4 - core index']
  #allocation1 [shape = 'u32[144,128]{1,0:T(1,128)}', space=vmem, size = 0x12000, scoped, tag = 'internal scratch']
  #allocation2 [shape = 'f32[16,1]{1,0:T(8,128)}', space=vmem, size = 0x2000, scoped, tag = 'scratch operand']
  #allocation3 [shape = 'f32[16,1]{1,0:T(8,128)}', space=vmem, size = 0x2000, scoped, tag = 'scratch operand']
  #allocation4 [shape = 'f32[16,1]{1,0:T(8,128)}', space=vmem, size = 0x2000, scoped, tag = 'scratch operand']
  %s0 = inlined_call_operand.vmem [shape: f32[16,32], index: 0, kind: input, shape index: {}]
  %s1 = inlined_call_operand.hbm [shape: f32[32,256], index: 1, kind: input, shape index: {}]
  %s2 = inlined_call_operand.vmem [shape: f32[1,256], index: 2, kind: input, shape index: {}]
  %s3 = inlined_call_operand.vmem [shape: s32[16,1], index: 3, kind: input, shape index: {}]
  %s4 = inlined_call_operand.hbm [shape: f32[1,8,128], index: 4, kind: output, shape index: {}]
  %s5 = sld [smem:[#allocation0]]
  $region38: #{tpu_custom_call.1} parent=0
    _
  %s7 = ssub.s32 1, %s5
  %s8 = scalar_select 0, %s7, %s5
  $region1: #{tpu_custom_call.1} parent=0
    #allocation5 [shape = 'u8[32768]{0}', space=vmem, size = 0x8000, scoped, tag = 'input window, operand 1, single buffered']
    #allocation6 [shape = 's32[1]{0}', space=sflag, size = 0x4, scoped, tag = 'scoped memory for tpu_custom_call.1']
    #allocation7 [shape = 's32[1]{0}', space=sflag, size = 0x4, scoped, tag = 'scoped memory for tpu_custom_call.1']
    #allocation8 [shape = 'u8[4096]{0}', space=vmem, size = 0x1000, scoped, tag = 'output window, operand 0, single buffered']
    %9 = vsyncpa [#allocation6], 0
    %10 = vsyncpa [#allocation7], 0
    // Predicated region
    $region2: #{tpu_custom_call.1} parent=1 // pred_check
      _
    $region3: #{tpu_custom_call.1} parent=1 // pred_check_branch
      %12 = sbr.rel (0) target = $region5
    $region4: #{tpu_custom_call.1} parent=1 // pred_region
      _
    $region5: #{tpu_custom_call.1} parent=1 // pred_fallthru
      _
    // Predicated region
    $region6: #{tpu_custom_call.1} parent=1 // pred_check
      _
    $region7: #{tpu_custom_call.1} parent=1 // pred_check_branch
      %14 = sbr.rel (0) target = $region9
    $region8: #{tpu_custom_call.1} parent=1 // pred_region
      %s16 = ssub.s32 1024, 1024
      %17 = vsyncadd [#allocation6], %s16
      %s18 = sshll.u32 [#allocation5], 4
      %s19 = int_to_ptr.vmem [resolvable:$true] %s18
      %24 = dma.hbm_to_vmem [thread:$0]  %s1, 1024, %s19, [#allocation6], 256, 256, 16
    $region9: #{tpu_custom_call.1} parent=1 // pred_fallthru
      _
    // Predicated region
    $region10: #{tpu_custom_call.1} parent=1 // pred_check
      _
    $region11: #{tpu_custom_call.1} parent=1 // pred_check_branch
      %26 = sbr.rel (0) target = $region13
    $region12: #{tpu_custom_call.1} parent=1 // pred_region
      _
    $region13: #{tpu_custom_call.1} parent=1 // pred_fallthru
      _
    // Predicated region
    $region14: #{tpu_custom_call.1} parent=1 // pred_check
      _
    $region15: #{tpu_custom_call.1} parent=1 // pred_check_branch
      %28 = sbr.rel (0) target = $region17
    $region16: #{tpu_custom_call.1} parent=1 // pred_region
      _
    $region17: #{tpu_custom_call.1} parent=1 // pred_fallthru
      _
    // Predicated region
    $region18: #{tpu_custom_call.1} parent=1 // pred_check
      _
    $region19: #{tpu_custom_call.1} parent=1 // pred_check_branch
      %30 = sbr.rel (0) target = $region21
    $region20: #{tpu_custom_call.1} parent=1 // pred_region
      %31 = dma.done [#allocation6], 1024
    $region21: #{tpu_custom_call.1} parent=1 // pred_fallthru
      _
    %p32 = scmp.eq.s32.totalorder 0, 0
    // Predicated region
    $region22: #{tpu_custom_call.1} parent=1 // pred_check
      %p33 = pneg %p32
    $region23: #{tpu_custom_call.1} parent=1 // pred_check_branch
      %35 = sbr.rel (%p33) target = $region25
    $region24: #{tpu_custom_call.1} parent=1 // pred_region
      %vm36 = vcmask 7168
      %37 = vst.msk [vmem:[#allocation2] sm:$0xff] %vm36, -inf
      %38 = vst.msk [vmem:[#allocation2 + $0x8] sm:$0xff] %vm36, -inf
      %39 = vst.msk [vmem:[#allocation3] sm:$0xff] %vm36, 0.0
      %40 = vst.msk [vmem:[#allocation3 + $0x8] sm:$0xff] %vm36, 0.0
      %41 = vst.msk [vmem:[#allocation4] sm:$0xff] %vm36, 0.0
      %42 = vst.msk [vmem:[#allocation4 + $0x8] sm:$0xff] %vm36, 0.0
    $region25: #{tpu_custom_call.1} parent=1 // pred_fallthru
      _
    %v43 = vld [vmem:[%s0] sm:$0xff]
    %v44 = vld [vmem:[%s0 + $0x8] sm:$0xff]
    %v45 = vld [vmem:[#allocation5] sm:$0xff]
    %v46 = vld [vmem:[#allocation5 + $0x8] sm:$0xff]
    %v47 = vld [vmem:[#allocation5 + $0x10] sm:$0xff]
    %v48 = vld [vmem:[#allocation5 + $0x18] sm:$0xff]
    %v49 = vld [vmem:[#allocation5 + $0x20] sm:$0xff]
    %v50 = vld [vmem:[#allocation5 + $0x28] sm:$0xff]
    %v51 = vld [vmem:[#allocation5 + $0x30] sm:$0xff]
    %v52 = vld [vmem:[#allocation5 + $0x38] sm:$0xff]
    %v53 = vld [vmem:[%s2] sm:$0x3]
    %v55 = vlaneseq
    %v56 = vshrl.u32 %v55, 7
    %v57 = vsub.s32 0, %v56
    %v58 = vrot.slane %v53, %v57
    %v59 = vlaneseq
    %v60 = vshrl.u32 %v59, 7
    %v61 = vsub.s32 1, %v60
    %v62 = vrot.slane %v53, %v61
    %vm65 = vcmask 261120
    %v67 = vsel %vm65, %v43, 0
    %v70 = vsel %vm65, %v44, 0
    %72 = vmatprep.subr.mxu0 %v46
    %73 = vmatpush1.msra.mxu0 %v45
    %74 = vmatprep.subr.mxu0 %v48
    %75 = vmatpush1.msra.mxu0 %v47
    %76 = vmatprep.subr.mxu0 %v50
    %77 = vmatpush1.msra.mxu0 %v49
    %78 = vmatprep.subr.mxu0 %v52
    %79 = vmatpush1.msra.mxu0 %v51
    %80 = vmatprep.subr.mxu0 0.0
    %81 = vmatpush1.msra.mxu0 0.0
    %82 = vmatprep.subr.mxu0 0.0
    %83 = vmatpush1.msra.mxu0 0.0
    %84 = vmatprep.subr.mxu0 0.0
    %85 = vmatpush1.msra.mxu0 0.0
    %86 = vmatprep.subr.mxu0 0.0
    %87 = vmatpush1.msra.mxu0 0.0
    %88 = vmatprep.subr.mxu0 0.0
    %89 = vmatpush1.msra.mxu0 0.0
    %90 = vmatprep.subr.mxu0 0.0
    %91 = vmatpush1.msra.mxu0 0.0
    %92 = vmatprep.subr.mxu0 0.0
    %93 = vmatpush1.msra.mxu0 0.0
    %94 = vmatprep.subr.mxu0 0.0
    %95 = vmatpush1.msra.mxu0 0.0
    %96 = vmatprep.subr.mxu0 0.0
    %97 = vmatpush1.msra.mxu0 0.0
    %98 = vmatprep.subr.mxu0 0.0
    %99 = vmatpush1.msra.mxu0 0.0
    %100 = vmatprep.subr.mxu0 0.0
    %101 = vmatpush1.msra.mxu0 0.0
    %102 = vmatprep.subr.mxu0 0.0
    %103 = vmatpush1.msra.mxu0 0.0
    %104 = vmatprep.subr.mxu0 0.0
    %105 = vmatpush1.msra.mxu0 0.0
    %106 = vmatprep.subr.mxu0 0.0
    %107 = vmatpush1.msra.mxu0 0.0
    %108 = vmatprep.subr.mxu0 0.0
    %109 = vmatpush1.msra.mxu0 0.0
    %110 = vmatprep.subr.mxu0 0.0
    %111 = vmatpush1.msra.mxu0 0.0
    %112 = vmatprep.subr.mxu0 0.0
    %113 = vmatpush1.msra.mxu0 0.0
    %114 = vmatprep.subr.mxu0 0.0
    %115 = vmatpush1.msra.mxu0 0.0
    %116 = vmatprep.subr.mxu0 0.0
    %117 = vmatpush1.msra.mxu0 0.0
    %118 = vmatprep.subr.mxu0 0.0
    %119 = vmatpush1.msra.mxu0 0.0
    %120 = vmatprep.subr.mxu0 0.0
    %121 = vmatpush1.msra.mxu0 0.0
    %122 = vmatprep.subr.mxu0 0.0
    %123 = vmatpush1.msra.mxu0 0.0
    %124 = vmatprep.subr.mxu0 0.0
    %125 = vmatpush1.msra.mxu0 0.0
    %126 = vmatprep.subr.mxu0 0.0
    %127 = vmatpush1.msra.mxu0 0.0
    %128 = vmatprep.subr.mxu0 0.0
    %129 = vmatpush1.msra.mxu0 0.0
    %130 = vmatprep.subr.mxu0 0.0
    %131 = vmatpush1.msra.mxu0 0.0
    %132 = vmatprep.subr.mxu0 0.0
    %133 = vmatpush1.msra.mxu0 0.0
    %134 = vmatprep.subr.mxu0 0.0
    %135 = vmatpush1.msra.mxu0 0.0
    %136 = vmatprep.mubr.f32.mxu0 0.0
    %137 = vmatmul.mubr.f32.gmra.mrb[0].mxu0 %v67
    %v138 = vpop.f32.mrb[0].mxu0
    %v139 = vadd.f32 %v58, %v138
    %v140 = vpop.f32.mrb[0].mxu0
    %v141 = vadd.f32 %v62, %v140
    %142 = vmatprep.mubr.f32.mxu0 0.0
    %143 = vmatmul.mubr.f32.gmra.mrb[0].mxu0 %v70
    %v144 = vpop.f32.mrb[0].mxu0
    %v145 = vadd.f32 %v58, %v144
    %v146 = vpop.f32.mrb[0].mxu0
    %v147 = vadd.f32 %v62, %v146
    %148 = vdwg.mxu0
    %s149 = smul.u32 0, 256
    %v150 = vlaneseq
    %v151 = vand.u32 %v150, 127
    %v152 = vadd.s32 %v151, 128
    %v153 = vstv %s149
    %v154 = vadd.s32 %v153, %v151
    %v155 = vadd.s32 %v153, %v152
    %vm156 = vcmp.lt.s32.totalorder %v154, 200
    %vm157 = vcmp.lt.s32.totalorder %v155, 200
    %v158 = vsel %vm156, %v139, -inf
    %v159 = vsel %vm157, %v141, -inf
    %v160 = vsel %vm156, %v145, -inf
    %v161 = vsel %vm157, %v147, -inf
    %v162 = vld [vmem:[#allocation2] sm:$0xff]
    %v163 = vld [vmem:[#allocation2 + $0x8] sm:$0xff]
    %v164 = vmax.f32 %v158, %v159
    %165 = vmax.xlane.f32.xlu0 %v164
    %v166 = vpop.xlane.xlu0 %165
    %v167 = vmax.f32 %v160, %v161
    %168 = vmax.xlane.f32.xlu0 %v167
    %v169 = vpop.xlane.xlu0 %168
    %v170 = vmax.f32 %v162, %v166
    %v171 = vmax.f32 %v163, %v169
    %v172 = vsub.f32 %v162, %v170
    %v173 = vsub.f32 %v163, %v171
    %v174 = vmul.f32 %v172, 1.442695
    %v175 = vpow.pop %v174
    %v176 = vmul.f32 %v173, 1.442695
    %v177 = vpow.pop %v176
    %v178 = vld [vmem:[#allocation3] sm:$0xff]
    %v179 = vld [vmem:[#allocation3 + $0x8] sm:$0xff]
    %v180 = vmul.f32 %v178, %v175
    %v181 = vmul.f32 %v179, %v177
    %183 = vset.pattern.permute.xlu0 0
    %184 = vperm.xlu0 %183, %v170
    %v185 = vpop.permute.xlu0 %184
    %188 = vset.pattern.permute.xlu0 0
    %189 = vperm.xlu0 %188, %v171
    %v190 = vpop.permute.xlu0 %189
    %v192 = vsub.f32 %v158, %v185
    %v193 = vsub.f32 %v159, %v185
    %v194 = vsub.f32 %v160, %v190
    %v195 = vsub.f32 %v161, %v190
    %v196 = vmul.f32 %v192, 1.442695
    %v197 = vpow.pop %v196
    %v198 = vmul.f32 %v193, 1.442695
    %v199 = vpow.pop %v198
    %v200 = vmul.f32 %v194, 1.442695
    %v201 = vpow.pop %v200
    %v202 = vmul.f32 %v195, 1.442695
    %v203 = vpow.pop %v202
    %v204 = vadd.f32 %v197, %v199
    %205 = vadd.xlane.f32.xlu0 %v204
    %v206 = vpop.xlane.xlu0 %205
    %v207 = vadd.f32 %v201, %v203
    %208 = vadd.xlane.f32.xlu0 %v207
    %v209 = vpop.xlane.xlu0 %208
    %v210 = vadd.f32 %v180, %v206
    %v211 = vadd.f32 %v181, %v209
    %vm212 = vcmask 7168
    %213 = vst.msk [vmem:[#allocation3] sm:$0xff] %vm212, %v210
    %214 = vst.msk [vmem:[#allocation3 + $0x8] sm:$0xff] %vm212, %v211
    %215 = vst.msk [vmem:[#allocation2] sm:$0xff] %vm212, %v170
    %216 = vst.msk [vmem:[#allocation2 + $0x8] sm:$0xff] %vm212, %v171
    %v217 = vld [vmem:[%s3] sm:$0xff]
    %v218 = vld [vmem:[%s3 + $0x8] sm:$0xff]
    %v219 = vld [vmem:[#allocation4] sm:$0xff]
    %v220 = vld [vmem:[#allocation4 + $0x8] sm:$0xff]
    %221 = vset.pattern.permute.xlu0 0
    %222 = vperm.xlu0 %221, %v217
    %v223 = vpop.permute.xlu0 %222
    %224 = vset.pattern.permute.xlu0 0
    %225 = vperm.xlu0 %224, %v218
    %v226 = vpop.permute.xlu0 %225
    %vm227 = vcmp.eq.s32.totalorder %v154, %v223
    %vm228 = vcmp.eq.s32.totalorder %v155, %v223
    %vm229 = vcmp.eq.s32.totalorder %v154, %v226
    %vm230 = vcmp.eq.s32.totalorder %v155, %v226
    %v231 = vsel %vm227, %v158, 0.0
    %v232 = vsel %vm228, %v159, 0.0
    %v233 = vsel %vm229, %v160, 0.0
    %v234 = vsel %vm230, %v161, 0.0
    %v235 = vadd.f32 %v231, %v232
    %236 = vadd.xlane.f32.xlu0 %v235
    %v237 = vpop.xlane.xlu0 %236
    %v238 = vadd.f32 %v233, %v234
    %239 = vadd.xlane.f32.xlu0 %v238
    %v240 = vpop.xlane.xlu0 %239
    %v241 = vadd.f32 %v219, %v237
    %v242 = vadd.f32 %v220, %v240
    %243 = vst.msk [vmem:[#allocation4] sm:$0xff] %vm212, %v241
    %244 = vst.msk [vmem:[#allocation4 + $0x8] sm:$0xff] %vm212, %v242
    // Predicated region
    $region26: #{tpu_custom_call.1} parent=1 // pred_check
      %p245 = pneg %p32
    $region27: #{tpu_custom_call.1} parent=1 // pred_check_branch
      %247 = sbr.rel (%p245) target = $region29
    $region28: #{tpu_custom_call.1} parent=1 // pred_region
      %v248 = vld [vmem:[#allocation2] sm:$0xff]
      %v249 = vld [vmem:[#allocation2 + $0x8] sm:$0xff]
      %v250 = vld [vmem:[#allocation3] sm:$0xff]
      %v251 = vld [vmem:[#allocation3 + $0x8] sm:$0xff]
      %v252 = vlog2.pop %v250
      %v253 = vmul.f32 %v252, 0.6931472
      %v254 = vlog2.pop %v251
      %v255 = vmul.f32 %v254, 0.6931472
      %v256 = vadd.f32 %v248, %v253
      %v257 = vadd.f32 %v249, %v255
      %s258 = smul.u32 0, 16
      %v259 = vlaneseq
      %v260 = vshrl.u32 %v259, 7
      %v261 = vadd.s32 %v260, 8
      %v262 = vstv %s258
      %v263 = vadd.s32 %v262, %v260
      %v264 = vadd.s32 %v262, %v261
      %vm265 = vcmp.lt.s32.totalorder %v263, 16
      %vm266 = vcmp.lt.s32.totalorder %v264, 16
      %v267 = vld [vmem:[#allocation4] sm:$0xff]
      %v268 = vld [vmem:[#allocation4 + $0x8] sm:$0xff]
      %v269 = vsub.f32 %v256, %v267
      %v270 = vsub.f32 %v257, %v268
      %v271 = vsel %vm265, %v269, 0.0
      %v272 = vsel %vm266, %v270, 0.0
      %v273 = vsel %vm212, %v271, 0.0
      %v274 = vsel %vm212, %v272, 0.0
      %v275 = vadd.f32 %v273, %v274
      %276 = vadd.xlane.f32.xlu0 %v275
      %v277 = vpop.xlane.xlu0 %276
      %v278 = vrot.slane %v277, 4
      %v279 = vadd.f32 %v277, %v278
      %v280 = vrot.slane %v279, 2
      %v281 = vadd.f32 %v279, %v280
      %v282 = vrot.slane %v281, 1
      %v283 = vadd.f32 %v281, %v282
      %s284 = vtos %v283
      %v285 = vstv %s284
      %286 = vst [vmem:[#allocation8] sm:$0xff] %v285
    $region29: #{tpu_custom_call.1} parent=1 // pred_fallthru
      _
    // Predicated region
    $region30: #{tpu_custom_call.1} parent=1 // pred_check
      _
    $region31: #{tpu_custom_call.1} parent=1 // pred_check_branch
      %288 = sbr.rel (0) target = $region33
    $region32: #{tpu_custom_call.1} parent=1 // pred_region
      %s290 = ssub.s32 128, 128
      %291 = vsyncadd [#allocation7], %s290
      %s293 = sshll.u32 [#allocation8], 4
      %s294 = int_to_ptr.vmem [resolvable:$true] %s293
      %296 = dma.vmem_to_hbm [thread:$0]  %s294, 128, %s4, [#allocation7]
    $region33: #{tpu_custom_call.1} parent=1 // pred_fallthru
      _
    // Predicated region
    $region34: #{tpu_custom_call.1} parent=1 // pred_check
      _
    $region35: #{tpu_custom_call.1} parent=1 // pred_check_branch
      %298 = sbr.rel (0) target = $region37
    $region36: #{tpu_custom_call.1} parent=1 // pred_region
      %299 = dma.done [#allocation7], 128
    $region37: #{tpu_custom_call.1} parent=1 // pred_fallthru
      _
    %300 = vsyncpa [#allocation6], 1
    %301 = vsyncpa [#allocation7], 1

</llo_original>
